<compile_context>
chip_gen: v7x
topology: tpu7x:2x2x1
jax: 0.10.0
libtpu: 0.0.40
codegen_flags: <defaults>
</compile_context>

<pallas_src>
import functools

import jax
import jax.numpy as jnp
from jax import lax
from jax.experimental import pallas as pl
from jax.experimental.pallas import tpu as pltpu


def _round_up(x, m):
    return pl.cdiv(x, m) * m


def _related_kernel(ids_ref, table_ref, out_ref, counts_ref, acc_ref, *, inv_s):
    """Grid = (batch_tiles, vocab_tiles, seq_chunks), seq innermost.

    ids_ref    : VMEM (SC, BT) int32 -- seq-major chunk of token ids (pad = -1)
    table_ref  : VMEM (VT, Lp)       -- one vocab tile of the padded table
    out_ref    : VMEM (BT, Lp) f32   -- mean relatedness for this batch tile
    counts_ref : VMEM (BT, VT) f32   -- per-vocab-tile token counts (scratch)
    acc_ref    : VMEM (BT, Lp) f32   -- matmul accumulator (scratch)
    """
    k = pl.program_id(1)            # vocab tile
    s = pl.program_id(2)            # seq chunk
    nk = pl.num_programs(1)
    ns = pl.num_programs(2)

    VT = table_ref.shape[0]

    @pl.when((k == 0) & (s == 0))
    def _():
        acc_ref[...] = jnp.zeros_like(acc_ref)

    @pl.when(s == 0)
    def _():
        counts_ref[...] = jnp.zeros_like(counts_ref)

    # Global vocab ids covered by this table tile (hoisted, computed once/step).
    tile_ids = k * VT + lax.broadcasted_iota(jnp.int32, (1, 1, VT), 2)  # (1,1,VT)

    # One-hot over this seq chunk only; padded ids are -1 and never match.
    ids = ids_ref[...]                                   # (SC, BT)
    onehot = ids[:, :, None] == tile_ids                 # bool (SC, BT, VT)
    # Sum over the leading (seq) axis: plain VALU adds over (BT, VT) slabs,
    # int accumulate, cast only the small (BT, VT) result.
    partial = jnp.sum(onehot, axis=0)                    # int32 (BT, VT)
    counts_ref[...] += partial.astype(jnp.float32)

    # One MXU matmul per vocab tile, once the whole sequence has been counted.
    @pl.when(s == ns - 1)
    def _():
        acc_ref[...] += jnp.dot(
            counts_ref[...].astype(table_ref.dtype),
            table_ref[...],
            preferred_element_type=jnp.float32,
        )

    # Single epilogue: scale by 1/S and emit the lane-dense (BT, Lp) slab.
    @pl.when((k == nk - 1) & (s == ns - 1))
    def _():
        out_ref[...] = (acc_ref[...] * inv_s).astype(out_ref.dtype)


class RelatedEmbeddings:
    """Pallas TPU equivalent of the PyTorch RelatedEmbeddings module."""

    def __init__(self, related_embeddings, *, vocab_tile=512,
                 table_dtype=jnp.float32):
        table = jnp.asarray(related_embeddings, dtype=jnp.float32)
        V, L = table.shape
        self.V, self.L = V, L
        self.Lp = _round_up(L, 128)
        self.Vp = _round_up(V, 128)

        # Vocab tile: a multiple of 128 that divides Vp (K dim of the matmul,
        # lane dim of counts).
        vt = min(self.Vp, _round_up(vocab_tile, 128))
        while self.Vp % vt:
            vt -= 128
        self.VT = max(vt, 128)

        # Pad + cast ONCE at init, not per call (avoids an O(V*L) copy per
        # forward).  Use table_dtype=jnp.bfloat16 on v6e/v7x for the native
        # MXU rate / half the table traffic.
        self.table_p = (
            jnp.zeros((self.Vp, self.Lp), table_dtype)
            .at[:V, :L].set(table.astype(table_dtype))
        )

    def __call__(self, input_ids, *, batch_tile=128, seq_chunk=16):
        input_ids = jnp.asarray(input_ids, dtype=jnp.int32)
        B, S = input_ids.shape
        assert S > 0, "sequence length must be positive (mean over dim=1)"

        # Batch tile: 128 for real batches (fills the MXU M dim), otherwise the
        # whole (8-rounded) batch so tiny inputs stay a single tile.
        BT = batch_tile if B > batch_tile else _round_up(B, 8)
        Bp = _round_up(B, BT)
        # Seq chunk: multiple of 8 (sublane dim of the ids block).
        SC = min(_round_up(S, 8), _round_up(seq_chunk, 8))
        Sp = _round_up(S, SC)
        VT, Vp, Lp = self.VT, self.Vp, self.Lp

        # Pad ids with -1 (never matches a vocab row -> contributes zero; note
        # PyTorch nn.Embedding would raise on genuinely out-of-range ids) and
        # transpose to seq-major so batch sits on lanes, seq chunk on sublanes.
        ids_p = jnp.full((Bp, Sp), -1, jnp.int32).at[:B, :S].set(input_ids)
        ids_t = ids_p.T                                   # (Sp, Bp)

        grid = (Bp // BT, Vp // VT, Sp // SC)

        # Footprint-driven VMEM limit (double-buffered tiles + scratch + the
        # per-chunk one-hot), clamped to stay safe on v7x's 64 MiB VMEM.
        tbytes = self.table_p.dtype.itemsize
        footprint = (
            2 * SC * BT * 4            # ids tiles (double buffered)
            + 2 * VT * Lp * tbytes     # table tiles (double buffered)
            + 2 * BT * Lp * 4          # output tiles
            + BT * Lp * 4              # acc scratch
            + BT * VT * 4              # counts scratch
            + 3 * SC * BT * VT * 4     # one-hot / compare intermediates
        )
        vmem_limit = int(min(48 * 1024 * 1024,
                             max(32 * 1024 * 1024, 2 * footprint)))

        kernel = functools.partial(_related_kernel, inv_s=1.0 / S)

        out = pl.pallas_call(
            kernel,
            out_shape=jax.ShapeDtypeStruct((Bp, Lp), jnp.float32),
            grid=grid,
            in_specs=[
                # Seq-major ids chunk for this (batch tile, seq chunk).
                pl.BlockSpec((SC, BT), lambda i, k, s: (s, i)),
                # Vocab tile of the table, auto-pipelined; constant across the
                # inner seq axis so it is DMA'd once per vocab step.
                pl.BlockSpec((VT, Lp), lambda i, k, s: (k, 0)),
            ],
            out_specs=pl.BlockSpec((BT, Lp), lambda i, k, s: (i, 0)),
            scratch_shapes=[
                pltpu.VMEM((BT, VT), jnp.float32),   # counts
                pltpu.VMEM((BT, Lp), jnp.float32),   # accumulator
            ],
            compiler_params=pltpu.CompilerParams(
                dimension_semantics=("parallel", "arbitrary", "arbitrary"),
                vmem_limit_bytes=vmem_limit,
            ),
        )(ids_t, self.table_p)

        return out[:B, :self.L]


if __name__ == "__main__":
    key = jax.random.PRNGKey(0)
    k_tab, k_ids, k_tab2, k_ids2 = jax.random.split(key, 4)

    # Small shapes consistent with the module: vocab=64, labels=32, B=2, S=8.
    V, L = 64, 32
    B, S = 2, 8
    related_table = jax.random.normal(k_tab, (V, L), dtype=jnp.float32)
    input_ids = jax.random.randint(k_ids, (B, S), minval=0, maxval=V,
                                   dtype=jnp.int32)

    module = RelatedEmbeddings(related_table)
    out = jax.block_until_ready(module(input_ids))
    ref = jnp.mean(related_table[input_ids], axis=1)
    assert out.shape == (B, L), out.shape
    assert jnp.allclose(out, ref, atol=1e-5, rtol=1e-5), "mismatch vs reference"

    # Second (still small) case exercising the multi-tile accumulator path:
    # 3 vocab tiles, 2 seq chunks, padded batch/seq/vocab/labels.
    V2, L2 = 300, 40
    B2, S2 = 10, 20
    table2 = jax.random.normal(k_tab2, (V2, L2), dtype=jnp.float32)
    ids2 = jax.random.randint(k_ids2, (B2, S2), minval=0, maxval=V2,
                              dtype=jnp.int32)
    module2 = RelatedEmbeddings(table2, vocab_tile=128)
    out2 = jax.block_until_ready(module2(ids2))
    ref2 = jnp.mean(table2[ids2], axis=1)
    assert out2.shape == (B2, L2), out2.shape
    assert jnp.allclose(out2, ref2, atol=1e-5, rtol=1e-5), "mismatch (tiled path)"

    print("KERNEL_OK")
</pallas_src>

<mosaic_0001>
module attributes {stable_mosaic.version = 11 : i64} {
  func.func @_related_kernel(%arg0: i32, %arg1: i32, %arg2: i32, %arg3: memref<8x8xi32, #tpu.memory_space<vmem>>, %arg4: memref<128x128xf32, #tpu.memory_space<vmem>>, %arg5: memref<8x128xf32, #tpu.memory_space<vmem>>, %arg6: memref<8x128xf32, #tpu.memory_space<vmem>>, %arg7: memref<8x128xf32, #tpu.memory_space<vmem>>) attributes {dimension_semantics = [#tpu.dimension_semantics<parallel>, #tpu.dimension_semantics<arbitrary>, #tpu.dimension_semantics<arbitrary>], iteration_bounds = array<i64: 1, 1, 1>, scalar_prefetch = 0 : i64, scratch_operands = 2 : i64, tpu.core_type = #tpu.core_type<tc>, window_params = [{transform_indices = @transform_0, window_bounds = array<i64: 8, 8>}, {transform_indices = @transform_1, window_bounds = array<i64: 128, 128>}, {transform_indices = @transform_2, window_bounds = array<i64: 8, 128>}]} {
    %c0_i32 = arith.constant 0 : i32
    %0 = arith.cmpi eq, %arg1, %c0_i32 : i32
    %c0_i32_0 = arith.constant 0 : i32
    %1 = arith.cmpi eq, %arg2, %c0_i32_0 : i32
    %2 = arith.andi %0, %1 : i1
    %3 = arith.extui %2 : i1 to i32
    %c0_i32_1 = arith.constant 0 : i32
    %4 = arith.cmpi ne, %3, %c0_i32_1 : i32
    scf.if %4 {
      %cst_14 = arith.constant 0.000000e+00 : f32
      %31 = vector.broadcast %cst_14 : f32 to vector<8x128xf32>
      %c0_15 = arith.constant 0 : index
      %c0_16 = arith.constant 0 : index
      %32 = vector.load %arg7[%c0_15, %c0_16] : memref<8x128xf32, #tpu.memory_space<vmem>>, vector<8x128xf32>
      tpu.vector_store %arg7[%c0_15, %c0_16], %31 {strides = array<i32>} : memref<8x128xf32, #tpu.memory_space<vmem>>, vector<8x128xf32>,
    } else {
    }
    %c0_i32_2 = arith.constant 0 : i32
    %5 = arith.cmpi eq, %arg2, %c0_i32_2 : i32
    %6 = arith.extui %5 : i1 to i32
    %c0_i32_3 = arith.constant 0 : i32
    %7 = arith.cmpi ne, %6, %c0_i32_3 : i32
    scf.if %7 {
      %cst_14 = arith.constant 0.000000e+00 : f32
      %31 = vector.broadcast %cst_14 : f32 to vector<8x128xf32>
      %c0_15 = arith.constant 0 : index
      %c0_16 = arith.constant 0 : index
      %32 = vector.load %arg6[%c0_15, %c0_16] : memref<8x128xf32, #tpu.memory_space<vmem>>, vector<8x128xf32>
      tpu.vector_store %arg6[%c0_15, %c0_16], %31 {strides = array<i32>} : memref<8x128xf32, #tpu.memory_space<vmem>>, vector<8x128xf32>,
    } else {
    }
    %c128_i32 = arith.constant 128 : i32
    %8 = arith.muli %arg1, %c128_i32 : i32
    %9 = tpu.iota {dimensions = array<i32: 2>} : vector<1x1x128xi32>
    %10 = vector.broadcast %8 : i32 to vector<1x1x128xi32>
    %11 = arith.addi %10, %9 : vector<1x1x128xi32>
    %c0 = arith.constant 0 : index
    %c0_4 = arith.constant 0 : index
    %12 = vector.load %arg3[%c0, %c0_4] : memref<8x8xi32, #tpu.memory_space<vmem>>, vector<8x8xi32>
    %13 = vector.shape_cast %12 : vector<8x8xi32> to vector<8x8x1xi32>
    %14 = vector.broadcast %13 : vector<8x8x1xi32> to vector<8x8x128xi32>
    %15 = vector.broadcast %11 : vector<1x1x128xi32> to vector<8x8x128xi32>
    %16 = arith.cmpi eq, %14, %15 : vector<8x8x128xi32>
    %17 = arith.extui %16 : vector<8x8x128xi1> to vector<8x8x128xi32>
    %cst = arith.constant dense<0> : vector<8x128xi32>
    %18 = vector.multi_reduction <add>, %17, %cst [0] : vector<8x8x128xi32> to vector<8x128xi32>
    %c0_5 = arith.constant 0 : index
    %c0_6 = arith.constant 0 : index
    %19 = vector.load %arg6[%c0_5, %c0_6] : memref<8x128xf32, #tpu.memory_space<vmem>>, vector<8x128xf32>
    %20 = arith.sitofp %18 : vector<8x128xi32> to vector<8x128xf32>
    %21 = arith.addf %19, %20 : vector<8x128xf32>
    %c0_7 = arith.constant 0 : index
    %c0_8 = arith.constant 0 : index
    %22 = vector.load %arg6[%c0_7, %c0_8] : memref<8x128xf32, #tpu.memory_space<vmem>>, vector<8x128xf32>
    tpu.vector_store %arg6[%c0_7, %c0_8], %21 {strides = array<i32>} : memref<8x128xf32, #tpu.memory_space<vmem>>, vector<8x128xf32>,
    %c0_i32_9 = arith.constant 0 : i32
    %23 = arith.cmpi eq, %arg2, %c0_i32_9 : i32
    %24 = arith.extui %23 : i1 to i32
    %c0_i32_10 = arith.constant 0 : i32
    %25 = arith.cmpi ne, %24, %c0_i32_10 : i32
    scf.if %25 {
      %c0_14 = arith.constant 0 : index
      %c0_15 = arith.constant 0 : index
      %31 = vector.load %arg7[%c0_14, %c0_15] : memref<8x128xf32, #tpu.memory_space<vmem>>, vector<8x128xf32>
      %c0_16 = arith.constant 0 : index
      %c0_17 = arith.constant 0 : index
      %32 = vector.load %arg6[%c0_16, %c0_17] : memref<8x128xf32, #tpu.memory_space<vmem>>, vector<8x128xf32>
      %c0_18 = arith.constant 0 : index
      %c0_19 = arith.constant 0 : index
      %33 = vector.load %arg4[%c0_18, %c0_19] : memref<128x128xf32, #tpu.memory_space<vmem>>, vector<128x128xf32>
      %cst_20 = arith.constant dense<0.000000e+00> : vector<8x128xf32>
      %34 = tpu.matmul %32, %33, %cst_20 {dimension_numbers = #tpu.dot_dimension_numbers<[1], [0], [0], [1], [0, 0, 1, 1], [], []>} : vector<8x128xf32>, vector<128x128xf32>, vector<8x128xf32> -> vector<8x128xf32>
      %35 = arith.addf %31, %34 : vector<8x128xf32>
      %c0_21 = arith.constant 0 : index
      %c0_22 = arith.constant 0 : index
      %36 = vector.load %arg7[%c0_21, %c0_22] : memref<8x128xf32, #tpu.memory_space<vmem>>, vector<8x128xf32>
      tpu.vector_store %arg7[%c0_21, %c0_22], %35 {strides = array<i32>} : memref<8x128xf32, #tpu.memory_space<vmem>>, vector<8x128xf32>,
    } else {
    }
    %c0_i32_11 = arith.constant 0 : i32
    %26 = arith.cmpi eq, %arg1, %c0_i32_11 : i32
    %c0_i32_12 = arith.constant 0 : i32
    %27 = arith.cmpi eq, %arg2, %c0_i32_12 : i32
    %28 = arith.andi %26, %27 : i1
    %29 = arith.extui %28 : i1 to i32
    %c0_i32_13 = arith.constant 0 : i32
    %30 = arith.cmpi ne, %29, %c0_i32_13 : i32
    scf.if %30 {
      %c0_14 = arith.constant 0 : index
      %c0_15 = arith.constant 0 : index
      %31 = vector.load %arg7[%c0_14, %c0_15] : memref<8x128xf32, #tpu.memory_space<vmem>>, vector<8x128xf32>
      %cst_16 = arith.constant 1.250000e-01 : f32
      %32 = vector.broadcast %cst_16 : f32 to vector<8x128xf32>
      %33 = arith.mulf %31, %32 : vector<8x128xf32>
      %c0_17 = arith.constant 0 : index
      %c0_18 = arith.constant 0 : index
      %34 = vector.load %arg5[%c0_17, %c0_18] : memref<8x128xf32, #tpu.memory_space<vmem>>, vector<8x128xf32>
      tpu.vector_store %arg5[%c0_17, %c0_18], %33 {strides = array<i32>} : memref<8x128xf32, #tpu.memory_space<vmem>>, vector<8x128xf32>,
    } else {
    }
    return
  }
  func.func @transform_0(%arg0: i32, %arg1: i32, %arg2: i32) -> (i32, i32) {
    %c0_i32 = arith.constant 0 : i32
    return %arg2, %arg0 : i32, i32
  }
  func.func @transform_1(%arg0: i32, %arg1: i32, %arg2: i32) -> (i32, i32) {
    %c0_i32 = arith.constant 0 : i32
    %c0_i32_0 = arith.constant 0 : i32
    return %arg1, %c0_i32 : i32, i32
  }
  func.func @transform_2(%arg0: i32, %arg1: i32, %arg2: i32) -> (i32, i32) {
    %c0_i32 = arith.constant 0 : i32
    %c0_i32_0 = arith.constant 0 : i32
    return %arg0, %c0_i32 : i32, i32
  }
}

</mosaic_0001>

<llo_original>
// kernel: tpu_custom_call.1
$region0: #{tpu_custom_call.1}
  #allocation0 [shape = 'u32[]', space=smem, size = 0x4, offset = 0x4, fixed_abs, tag = 'smem constant byte address 0x4 - core index']
  #allocation1 [shape = 'u32[144,128]{1,0:T(1,128)}', space=vmem, size = 0x12000, scoped, tag = 'internal scratch']
  #allocation2 [shape = 'f32[8,128]{1,0:T(8,128)}', space=vmem, size = 0x1000, scoped, tag = 'scratch operand']
  #allocation3 [shape = 'f32[8,128]{1,0:T(8,128)}', space=vmem, size = 0x1000, scoped, tag = 'scratch operand']
  %s0 = inlined_call_operand.hbm [shape: s32[8,8], index: 0, kind: input, shape index: {}]
  %s1 = inlined_call_operand.hbm [shape: f32[128,128], index: 1, kind: input, shape index: {}]
  %s2 = inlined_call_operand.hbm [shape: f32[8,128], index: 2, kind: output, shape index: {}]
  %s3 = sld [smem:[#allocation0]]
  $region42: #{tpu_custom_call.1} parent=0
    _
  %s5 = ssub.s32 1, %s3
  %s6 = scalar_select 0, %s5, %s3
  $region1: #{tpu_custom_call.1} parent=0
    #allocation4 [shape = 'u8[4096]{0}', space=vmem, size = 0x1000, scoped, tag = 'input window, operand 0, single buffered']
    #allocation5 [shape = 's32[1]{0}', space=sflag, size = 0x4, scoped, tag = 'scoped memory for tpu_custom_call.1']
    #allocation6 [shape = 's32[1]{0}', space=sflag, size = 0x4, scoped, tag = 'scoped memory for tpu_custom_call.1']
    #allocation7 [shape = 'u8[65536]{0}', space=vmem, size = 0x10000, scoped, tag = 'input window, operand 1, single buffered']
    #allocation8 [shape = 's32[1]{0}', space=sflag, size = 0x4, scoped, tag = 'scoped memory for tpu_custom_call.1']
    #allocation9 [shape = 'u8[4096]{0}', space=vmem, size = 0x1000, scoped, tag = 'output window, operand 0, single buffered']
    %7 = vsyncpa [#allocation5], 0
    %8 = vsyncpa [#allocation8], 0
    %9 = vsyncpa [#allocation6], 0
    // Predicated region
    $region2: #{tpu_custom_call.1} parent=1 // pred_check
      _
    $region3: #{tpu_custom_call.1} parent=1 // pred_check_branch
      %11 = sbr.rel (0) target = $region5
    $region4: #{tpu_custom_call.1} parent=1 // pred_region
      %s13 = ssub.s32 128, 128
      %14 = vsyncadd [#allocation5], %s13
      %s16 = sshll.u32 [#allocation4], 4
      %s17 = int_to_ptr.vmem [resolvable:$true] %s16
      %19 = dma.hbm_to_vmem [thread:$0]  %s0, 128, %s17, [#allocation5]
    $region5: #{tpu_custom_call.1} parent=1 // pred_fallthru
      _
    // Predicated region
    $region6: #{tpu_custom_call.1} parent=1 // pred_check
      _
    $region7: #{tpu_custom_call.1} parent=1 // pred_check_branch
      %21 = sbr.rel (0) target = $region9
    $region8: #{tpu_custom_call.1} parent=1 // pred_region
      %s23 = ssub.s32 2048, 2048
      %24 = vsyncadd [#allocation8], %s23
      %s25 = sshll.u32 [#allocation7], 4
      %s26 = int_to_ptr.vmem [resolvable:$true] %s25
      %31 = dma.hbm_to_vmem [thread:$0]  %s1, 2048, %s26, [#allocation8], 128, 128, 8
    $region9: #{tpu_custom_call.1} parent=1 // pred_fallthru
      _
    // Predicated region
    $region10: #{tpu_custom_call.1} parent=1 // pred_check
      _
    $region11: #{tpu_custom_call.1} parent=1 // pred_check_branch
      %33 = sbr.rel (0) target = $region13
    $region12: #{tpu_custom_call.1} parent=1 // pred_region
      %34 = dma.done [#allocation5], 128
    $region13: #{tpu_custom_call.1} parent=1 // pred_fallthru
      _
    // Predicated region
    $region14: #{tpu_custom_call.1} parent=1 // pred_check
      _
    $region15: #{tpu_custom_call.1} parent=1 // pred_check_branch
      %36 = sbr.rel (0) target = $region17
    $region16: #{tpu_custom_call.1} parent=1 // pred_region
      %37 = dma.done [#allocation8], 2048
    $region17: #{tpu_custom_call.1} parent=1 // pred_fallthru
      _
    %p38 = scmp.eq.s32.totalorder 0, 0
    %p39 = scmp.eq.s32.totalorder 0, 0
    %p40 = pnand %p38, %p39
    %p41 = pneg %p40
    // Predicated region
    $region18: #{tpu_custom_call.1} parent=1 // pred_check
      _
    $region19: #{tpu_custom_call.1} parent=1 // pred_check_branch
      %43 = sbr.rel (%p40) target = $region21
    $region20: #{tpu_custom_call.1} parent=1 // pred_region
      %44 = vst [vmem:[#allocation3] sm:$0xff] 0.0
    $region21: #{tpu_custom_call.1} parent=1 // pred_fallthru
      _
    // Predicated region
    $region22: #{tpu_custom_call.1} parent=1 // pred_check
      %p45 = pneg %p39
    $region23: #{tpu_custom_call.1} parent=1 // pred_check_branch
      %47 = sbr.rel (%p45) target = $region25
    $region24: #{tpu_custom_call.1} parent=1 // pred_region
      %48 = vst [vmem:[#allocation2] sm:$0xff] 0.0
    $region25: #{tpu_custom_call.1} parent=1 // pred_fallthru
      _
    %s49 = smul.u32 0, 128
    %v50 = vlaneseq
    %v51 = vand.u32 %v50, 127
    %v52 = vstv %s49
    %v53 = vadd.s32 %v52, %v51
    %v54 = vld [vmem:[#allocation4] sm:$0xff]
    %v55 = vlaneseq
    %v56 = vshrl.u32 %v55, 7
    %v57 = vsub.s32 0, %v56
    %v58 = vrot.slane %v54, %v57
    %60 = vbcast.lane.b32.xlu0 %v58, 256
    %v61 = vpop.permute.xlu0 %60
    %v62 = vlaneseq
    %v63 = vshrl.u32 %v62, 7
    %v64 = vsub.s32 1, %v63
    %v65 = vrot.slane %v54, %v64
    %67 = vbcast.lane.b32.xlu0 %v65, 256
    %v68 = vpop.permute.xlu0 %67
    %v69 = vlaneseq
    %v70 = vshrl.u32 %v69, 7
    %v71 = vsub.s32 2, %v70
    %v72 = vrot.slane %v54, %v71
    %74 = vbcast.lane.b32.xlu0 %v72, 256
    %v75 = vpop.permute.xlu0 %74
    %v76 = vlaneseq
    %v77 = vshrl.u32 %v76, 7
    %v78 = vsub.s32 3, %v77
    %v79 = vrot.slane %v54, %v78
    %81 = vbcast.lane.b32.xlu0 %v79, 256
    %v82 = vpop.permute.xlu0 %81
    %v83 = vlaneseq
    %v84 = vshrl.u32 %v83, 7
    %v85 = vsub.s32 4, %v84
    %v86 = vrot.slane %v54, %v85
    %88 = vbcast.lane.b32.xlu0 %v86, 256
    %v89 = vpop.permute.xlu0 %88
    %v90 = vlaneseq
    %v91 = vshrl.u32 %v90, 7
    %v92 = vsub.s32 5, %v91
    %v93 = vrot.slane %v54, %v92
    %95 = vbcast.lane.b32.xlu0 %v93, 256
    %v96 = vpop.permute.xlu0 %95
    %v97 = vlaneseq
    %v98 = vshrl.u32 %v97, 7
    %v99 = vsub.s32 6, %v98
    %v100 = vrot.slane %v54, %v99
    %102 = vbcast.lane.b32.xlu0 %v100, 256
    %v103 = vpop.permute.xlu0 %102
    %v104 = vlaneseq
    %v105 = vshrl.u32 %v104, 7
    %v106 = vsub.s32 7, %v105
    %v107 = vrot.slane %v54, %v106
    %109 = vbcast.lane.b32.xlu0 %v107, 256
    %v110 = vpop.permute.xlu0 %109
    %vm111 = vcmp.eq.s32.totalorder %v61, %v53
    %vm112 = vcmp.eq.s32.totalorder %v68, %v53
    %vm113 = vcmp.eq.s32.totalorder %v75, %v53
    %vm114 = vcmp.eq.s32.totalorder %v82, %v53
    %vm115 = vcmp.eq.s32.totalorder %v89, %v53
    %vm116 = vcmp.eq.s32.totalorder %v96, %v53
    %vm117 = vcmp.eq.s32.totalorder %v103, %v53
    %vm118 = vcmp.eq.s32.totalorder %v110, %v53
    %v119 = vsel %vm111, 1, 0
    %v120 = vsel %vm112, 1, 0
    %v121 = vsel %vm113, 1, 0
    %v122 = vsel %vm114, 1, 0
    %v123 = vsel %vm115, 1, 0
    %v124 = vsel %vm116, 1, 0
    %v125 = vsel %vm117, 1, 0
    %v126 = vsel %vm118, 1, 0
    %v127 = vadd.s32 %v119, %v123
    %v128 = vadd.s32 %v120, %v124
    %v129 = vadd.s32 %v121, %v125
    %v130 = vadd.s32 %v122, %v126
    %v131 = vadd.s32 %v127, %v128
    %v132 = vadd.s32 %v129, %v130
    %v133 = vadd.s32 %v131, %v132
    %v134 = vld [vmem:[#allocation2] sm:$0xff]
    %v135 = vcvt.s32.f32 %v133
    %v136 = vadd.f32 %v134, %v135
    %137 = vst [vmem:[#allocation2] sm:$0xff] %v136
    // Predicated region
    $region26: #{tpu_custom_call.1} parent=1 // pred_check
      %p138 = pneg %p39
    $region27: #{tpu_custom_call.1} parent=1 // pred_check_branch
      %140 = sbr.rel (%p138) target = $region29
    $region28: #{tpu_custom_call.1} parent=1 // pred_region
      %v141 = vld [vmem:[#allocation3] sm:$0xff]
      %v142 = vld [vmem:[#allocation2] sm:$0xff]
      %v143 = vld [vmem:[#allocation7] sm:$0xff]
      %v144 = vld [vmem:[#allocation7 + $0x8] sm:$0xff]
      %v145 = vld [vmem:[#allocation7 + $0x10] sm:$0xff]
      %v146 = vld [vmem:[#allocation7 + $0x18] sm:$0xff]
      %v147 = vld [vmem:[#allocation7 + $0x20] sm:$0xff]
      %v148 = vld [vmem:[#allocation7 + $0x28] sm:$0xff]
      %v149 = vld [vmem:[#allocation7 + $0x30] sm:$0xff]
      %v150 = vld [vmem:[#allocation7 + $0x38] sm:$0xff]
      %v151 = vld [vmem:[#allocation7 + $0x40] sm:$0xff]
      %v152 = vld [vmem:[#allocation7 + $0x48] sm:$0xff]
      %v153 = vld [vmem:[#allocation7 + $0x50] sm:$0xff]
      %v154 = vld [vmem:[#allocation7 + $0x58] sm:$0xff]
      %v155 = vld [vmem:[#allocation7 + $0x60] sm:$0xff]
      %v156 = vld [vmem:[#allocation7 + $0x68] sm:$0xff]
      %v157 = vld [vmem:[#allocation7 + $0x70] sm:$0xff]
      %v158 = vld [vmem:[#allocation7 + $0x78] sm:$0xff]
      %159 = vmatprep.subr.mxu0 0.0
      %160 = vmatpush1.msra.mxu0 %v143
      %161 = vmatprep.subr.mxu0 0.0
      %162 = vmatpush1.msra.mxu0 %v144
      %163 = vmatprep.subr.mxu0 0.0
      %164 = vmatpush1.msra.mxu0 %v145
      %165 = vmatprep.subr.mxu0 0.0
      %166 = vmatpush1.msra.mxu0 %v146
      %167 = vmatprep.subr.mxu0 0.0
      %168 = vmatpush1.msra.mxu0 %v147
      %169 = vmatprep.subr.mxu0 0.0
      %170 = vmatpush1.msra.mxu0 %v148
      %171 = vmatprep.subr.mxu0 0.0
      %172 = vmatpush1.msra.mxu0 %v149
      %173 = vmatprep.subr.mxu0 0.0
      %174 = vmatpush1.msra.mxu0 %v150
      %175 = vmatprep.subr.mxu0 0.0
      %176 = vmatpush1.msra.mxu0 %v151
      %177 = vmatprep.subr.mxu0 0.0
      %178 = vmatpush1.msra.mxu0 %v152
      %179 = vmatprep.subr.mxu0 0.0
      %180 = vmatpush1.msra.mxu0 %v153
      %181 = vmatprep.subr.mxu0 0.0
      %182 = vmatpush1.msra.mxu0 %v154
      %183 = vmatprep.subr.mxu0 0.0
      %184 = vmatpush1.msra.mxu0 %v155
      %185 = vmatprep.subr.mxu0 0.0
      %186 = vmatpush1.msra.mxu0 %v156
      %187 = vmatprep.subr.mxu0 0.0
      %188 = vmatpush1.msra.mxu0 %v157
      %189 = vmatprep.subr.mxu0 0.0
      %190 = vmatpush1.msra.mxu0 %v158
      %191 = vmatprep.subr.mxu0 0.0
      %192 = vmatpush1.msra.mxu0 0.0
      %193 = vmatprep.subr.mxu0 0.0
      %194 = vmatpush1.msra.mxu0 0.0
      %195 = vmatprep.subr.mxu0 0.0
      %196 = vmatpush1.msra.mxu0 0.0
      %197 = vmatprep.subr.mxu0 0.0
      %198 = vmatpush1.msra.mxu0 0.0
      %199 = vmatprep.subr.mxu0 0.0
      %200 = vmatpush1.msra.mxu0 0.0
      %201 = vmatprep.subr.mxu0 0.0
      %202 = vmatpush1.msra.mxu0 0.0
      %203 = vmatprep.subr.mxu0 0.0
      %204 = vmatpush1.msra.mxu0 0.0
      %205 = vmatprep.subr.mxu0 0.0
      %206 = vmatpush1.msra.mxu0 0.0
      %207 = vmatprep.subr.mxu0 0.0
      %208 = vmatpush1.msra.mxu0 0.0
      %209 = vmatprep.subr.mxu0 0.0
      %210 = vmatpush1.msra.mxu0 0.0
      %211 = vmatprep.subr.mxu0 0.0
      %212 = vmatpush1.msra.mxu0 0.0
      %213 = vmatprep.subr.mxu0 0.0
      %214 = vmatpush1.msra.mxu0 0.0
      %215 = vmatprep.subr.mxu0 0.0
      %216 = vmatpush1.msra.mxu0 0.0
      %217 = vmatprep.subr.mxu0 0.0
      %218 = vmatpush1.msra.mxu0 0.0
      %219 = vmatprep.subr.mxu0 0.0
      %220 = vmatpush1.msra.mxu0 0.0
      %221 = vmatprep.subr.mxu0 0.0
      %222 = vmatpush1.msra.mxu0 0.0
      %223 = vmatprep.mubr.f32.mxu0 0.0
      %224 = vmatmul.mubr.f32.gmra.mrb[0].mxu0 %v142
      %v225 = vpop.f32.mrb[0].mxu0
      %v226 = vadd.f32 0.0, %v225
      %v227 = vpop.f32.mrb[0].mxu0
      %228 = vdwg.mxu0
      %v229 = vadd.f32 %v141, %v226
      %230 = vst [vmem:[#allocation3] sm:$0xff] %v229
    $region29: #{tpu_custom_call.1} parent=1 // pred_fallthru
      _
    // Predicated region
    $region30: #{tpu_custom_call.1} parent=1 // pred_check
      _
    $region31: #{tpu_custom_call.1} parent=1 // pred_check_branch
      %232 = sbr.rel (%p40) target = $region33
    $region32: #{tpu_custom_call.1} parent=1 // pred_region
      %v233 = vld [vmem:[#allocation3] sm:$0xff]
      %v234 = vmul.f32 %v233, 0.125
      %235 = vst [vmem:[#allocation9] sm:$0xff] %v234
    $region33: #{tpu_custom_call.1} parent=1 // pred_fallthru
      _
    // Predicated region
    $region34: #{tpu_custom_call.1} parent=1 // pred_check
      _
    $region35: #{tpu_custom_call.1} parent=1 // pred_check_branch
      %237 = sbr.rel (0) target = $region37
    $region36: #{tpu_custom_call.1} parent=1 // pred_region
      %s239 = ssub.s32 128, 128
      %240 = vsyncadd [#allocation6], %s239
      %s242 = sshll.u32 [#allocation9], 4
      %s243 = int_to_ptr.vmem [resolvable:$true] %s242
      %245 = dma.vmem_to_hbm [thread:$0]  %s243, 128, %s2, [#allocation6]
    $region37: #{tpu_custom_call.1} parent=1 // pred_fallthru
      _
    // Predicated region
    $region38: #{tpu_custom_call.1} parent=1 // pred_check
      _
    $region39: #{tpu_custom_call.1} parent=1 // pred_check_branch
      %247 = sbr.rel (0) target = $region41
    $region40: #{tpu_custom_call.1} parent=1 // pred_region
      %248 = dma.done [#allocation6], 128
    $region41: #{tpu_custom_call.1} parent=1 // pred_fallthru
      _
    %249 = vsyncpa [#allocation5], 1
    %250 = vsyncpa [#allocation8], 1
    %251 = vsyncpa [#allocation6], 1

</llo_original>
